<compile_context>
chip_gen: v7x
topology: tpu7x:2x2x1
jax: 0.10.0
libtpu: 0.0.40
codegen_flags: <defaults>
</compile_context>

<pallas_src>
import numpy as np
import jax
import jax.numpy as jnp
from jax.experimental import pallas as pl
from jax.experimental.pallas import tpu as pltpu

RHO = 1.3          # curvature of the Lorentz manifold
SQRT_RHO = RHO ** 0.5
NUM_STATES = 6
NUM_CELLS = 16
NUM_SITES = 8
DIM1 = 4           # ambient dimension of the Lorentz model (dim + 1)
LANES = NUM_SITES * NUM_CELLS   # 128 == exactly one vreg lane width


def logalike_kernel(x_ref, xtb_ref, cqi_ref, cqj_ref, out_ref):
    # ---- Lorentz distance for all (i, j) pairs, lane-dense ------------------
    x = x_ref[...]            # (N, DIM1)
    xtb = xtb_ref[...]        # (DIM1, LANES): signed X^T tiled, col k = s*N + j
    # K=4 unrolled VPU Gram: g[i, s*N + j] = <x_i, x_j>_L (signs folded into xtb)
    g = x[:, 0:1] * xtb[0:1, :]
    for k in range(1, DIM1):
        g = g + x[:, k:k + 1] * xtb[k:k + 1, :]                # (N, 128)
    z = jnp.maximum(-g / RHO, 1.0 + 1e-7)
    # arccosh(z) = log(z + sqrt((z-1)(z+1)))  -- stable form near z ~ 1
    dist = SQRT_RHO * jnp.log(z + jnp.sqrt((z - 1.0) * (z + 1.0)))
    e = jnp.exp(-0.5 * dist)                                   # t = dist / 2
    one_m_e = 1.0 - e

    # ---- per-(site, pair) likelihood ----------------------------------------
    ci = cqi_ref[0]   # (N, 128)  state (as f32) of cell i at site s, col = s*N + j
    qi = cqi_ref[1]   # (N, 128)  prior of cell i's observed state
    cj = cqj_ref[0]   # (1, 128)  state of cell j at site s
    qj = cqj_ref[1]   # (1, 128)

    p_i0 = jnp.where(ci == 0.0, e, qi * one_m_e)               # P[ancestor 0 -> s_i]
    p_j0 = jnp.where(cj == 0.0, e, qj * one_m_e)               # P[ancestor 0 -> s_j]
    same_edit = jnp.logical_and(ci == cj, ci != 0.0)           # shared edited ancestor
    pi_stat = 1.0 / NUM_STATES                                 # stationary_dist
    cur = pi_stat * p_i0 * p_j0 + jnp.where(same_edit, pi_stat, 0.0)

    # ---- mask j == i BEFORE the log (avoid 0 * -inf), reduce once -----------
    # column index = s*N + j  =>  j = col & (N-1) since N is a power of two
    col = jax.lax.broadcasted_iota(jnp.int32, (NUM_CELLS, LANES), 1)
    row_i = jax.lax.broadcasted_iota(jnp.int32, (NUM_CELLS, LANES), 0)
    cur = jnp.where((col & (NUM_CELLS - 1)) != row_i, cur, 1.0)
    out_ref[...] = jnp.sum(jnp.log(cur), axis=1, keepdims=True)


@jax.jit
def logalike_all(X, C, qobs):
    """Log-likelihood of every query cell i in one pallas_call. Returns (N, 1)."""
    N, S = C.shape
    # Plain-JAX layout glue (trace-time plumbing): lane-dense (., S*N) slabs,
    # column k = s*N + j.  Minkowski sign folded into the tiled X^T (row 0 neg).
    signs = jnp.concatenate([-jnp.ones((1,), jnp.float32),
                             jnp.ones((DIM1 - 1,), jnp.float32)])
    xtb = jnp.tile(X.T * signs[:, None], (1, S))               # (DIM1, S*N)
    Cf = C.astype(jnp.float32)
    ci = jnp.repeat(Cf, N, axis=1)                             # (N, S*N): C[i, s]
    qi = jnp.repeat(qobs, N, axis=1)                           # (N, S*N)
    cj = Cf.T.reshape(1, S * N)                                # (1, S*N): C[j, s]
    qj = qobs.T.reshape(1, S * N)                              # (1, S*N)
    cqi = jnp.stack([ci, qi])                                  # (2, N, S*N)
    cqj = jnp.stack([cj, qj])                                  # (2, 1, S*N)

    vmem = lambda: pl.BlockSpec(memory_space=pltpu.MemorySpace.VMEM)
    return pl.pallas_call(
        logalike_kernel,
        out_shape=jax.ShapeDtypeStruct((N, 1), jnp.float32),
        in_specs=[vmem() for _ in range(4)],
        out_specs=vmem(),
    )(X, xtb, cqi, cqj)


def logalike_forward(i, X, C, qobs):
    """Pallas equivalent of Logalike.forward(i): scalar log-likelihood.

    Prefer calling logalike_all once per (X, C, qobs) and indexing it when many
    queries i are needed -- the kernel is launch-overhead-bound.
    """
    return logalike_all(X, C, qobs)[i, 0]


def reference_numpy(i, X, C, qtab):
    """Pure-numpy reference of the same model (float64)."""
    X = np.asarray(X, dtype=np.float64)
    C = np.asarray(C)
    total = 0.0
    pi_stat = 1.0 / NUM_STATES
    for j in range(NUM_CELLS):
        if j == i:
            continue
        ip = -X[i, 0] * X[j, 0] + np.sum(X[i, 1:] * X[j, 1:])
        z = max(-ip / RHO, 1.0 + 1e-7)
        dist = np.sqrt(RHO) * np.arccosh(z)
        t = 0.5 * dist
        e = np.exp(-t)
        for s in range(NUM_SITES):
            si, sj = int(C[i, s]), int(C[j, s])
            p_i0 = e if si == 0 else qtab[s, si] * (1.0 - e)
            p_j0 = e if sj == 0 else qtab[s, sj] * (1.0 - e)
            cur = pi_stat * p_i0 * p_j0
            if si == sj and si != 0:
                cur += pi_stat
            assert cur > 0
            total += np.log(cur)
    return total


if __name__ == "__main__":
    key = jax.random.PRNGKey(0)
    k_x, k_c, k_q = jax.random.split(key, 3)

    # Points on the hyperboloid <x,x>_L = -rho
    x_rest = 0.5 * jax.random.normal(k_x, (NUM_CELLS, DIM1 - 1), dtype=jnp.float32)
    x0 = jnp.sqrt(RHO + jnp.sum(x_rest * x_rest, axis=-1, keepdims=True))
    X = jnp.concatenate([x0, x_rest], axis=-1)                      # (16, 4)

    # character matrix: integer states in [0, NUM_STATES)
    C = jax.random.randint(k_c, (NUM_CELLS, NUM_SITES), 0, NUM_STATES,
                           dtype=jnp.int32)                         # (16, 8)

    # per-site indel priors over edited states 1..NUM_STATES-1 (state 0 -> 0)
    raw = jax.random.uniform(k_q, (NUM_SITES, NUM_STATES), dtype=jnp.float32,
                             minval=0.1, maxval=1.0)
    raw = raw.at[:, 0].set(0.0)
    qtab = raw / jnp.sum(raw, axis=-1, keepdims=True)               # (8, 6)

    # glue gather: prior of each cell's observed state at each site
    qtab_np = np.asarray(qtab)
    C_np = np.asarray(C)
    qobs = jnp.asarray(qtab_np[np.arange(NUM_SITES)[None, :], C_np],
                       dtype=jnp.float32)                           # (16, 8)

    totals = jax.block_until_ready(logalike_all(X, C, qobs))        # (16, 1)
    X_np = np.asarray(X)
    for i in range(NUM_CELLS):
        want = reference_numpy(i, X_np, C_np, qtab_np)
        np.testing.assert_allclose(float(totals[i, 0]), want, rtol=5e-3, atol=1e-2)

    # single-query forward() path, matching the original module's signature
    out_3 = jax.block_until_ready(logalike_forward(3, X, C, qobs))
    np.testing.assert_allclose(float(out_3), reference_numpy(3, X_np, C_np, qtab_np),
                               rtol=5e-3, atol=1e-2)

    print("KERNEL_OK")
</pallas_src>

<mosaic_0001>
module attributes {stable_mosaic.version = 11 : i64} {
  func.func @logalike_kernel(%arg0: memref<16x4xf32, #tpu.memory_space<vmem>>, %arg1: memref<4x128xf32, #tpu.memory_space<vmem>>, %arg2: memref<2x16x128xf32, #tpu.memory_space<vmem>>, %arg3: memref<2x1x128xf32, #tpu.memory_space<vmem>>, %arg4: memref<16x1xf32, #tpu.memory_space<vmem>>) attributes {dimension_semantics = [], scalar_prefetch = 0 : i64, scratch_operands = 0 : i64, tpu.core_type = #tpu.core_type<tc>} {
    %c0 = arith.constant 0 : index
    %c0_0 = arith.constant 0 : index
    %0 = vector.load %arg0[%c0, %c0_0] : memref<16x4xf32, #tpu.memory_space<vmem>>, vector<16x4xf32>
    %c0_1 = arith.constant 0 : index
    %c0_2 = arith.constant 0 : index
    %1 = vector.load %arg1[%c0_1, %c0_2] : memref<4x128xf32, #tpu.memory_space<vmem>>, vector<4x128xf32>
    %2 = vector.extract_strided_slice %0 {offsets = [0, 0], sizes = [16, 1], strides = [1, 1]} : vector<16x4xf32> to vector<16x1xf32>
    %3 = vector.extract_strided_slice %1 {offsets = [0, 0], sizes = [1, 128], strides = [1, 1]} : vector<4x128xf32> to vector<1x128xf32>
    %4 = vector.broadcast %2 : vector<16x1xf32> to vector<16x128xf32>
    %5 = vector.broadcast %3 : vector<1x128xf32> to vector<16x128xf32>
    %6 = arith.mulf %4, %5 : vector<16x128xf32>
    %7 = vector.extract_strided_slice %0 {offsets = [0, 1], sizes = [16, 1], strides = [1, 1]} : vector<16x4xf32> to vector<16x1xf32>
    %8 = vector.extract_strided_slice %1 {offsets = [1, 0], sizes = [1, 128], strides = [1, 1]} : vector<4x128xf32> to vector<1x128xf32>
    %9 = vector.broadcast %7 : vector<16x1xf32> to vector<16x128xf32>
    %10 = vector.broadcast %8 : vector<1x128xf32> to vector<16x128xf32>
    %11 = arith.mulf %9, %10 : vector<16x128xf32>
    %12 = arith.addf %6, %11 : vector<16x128xf32>
    %13 = vector.extract_strided_slice %0 {offsets = [0, 2], sizes = [16, 1], strides = [1, 1]} : vector<16x4xf32> to vector<16x1xf32>
    %14 = vector.extract_strided_slice %1 {offsets = [2, 0], sizes = [1, 128], strides = [1, 1]} : vector<4x128xf32> to vector<1x128xf32>
    %15 = vector.broadcast %13 : vector<16x1xf32> to vector<16x128xf32>
    %16 = vector.broadcast %14 : vector<1x128xf32> to vector<16x128xf32>
    %17 = arith.mulf %15, %16 : vector<16x128xf32>
    %18 = arith.addf %12, %17 : vector<16x128xf32>
    %19 = vector.extract_strided_slice %0 {offsets = [0, 3], sizes = [16, 1], strides = [1, 1]} : vector<16x4xf32> to vector<16x1xf32>
    %20 = vector.extract_strided_slice %1 {offsets = [3, 0], sizes = [1, 128], strides = [1, 1]} : vector<4x128xf32> to vector<1x128xf32>
    %21 = vector.broadcast %19 : vector<16x1xf32> to vector<16x128xf32>
    %22 = vector.broadcast %20 : vector<1x128xf32> to vector<16x128xf32>
    %23 = arith.mulf %21, %22 : vector<16x128xf32>
    %24 = arith.addf %18, %23 : vector<16x128xf32>
    %cst = arith.constant 0.000000e+00 : f32
    %25 = vector.broadcast %cst : f32 to vector<16x128xf32>
    %26 = arith.subf %25, %24 : vector<16x128xf32>
    %cst_3 = arith.constant 1.300000e+00 : f32
    %27 = vector.broadcast %cst_3 : f32 to vector<16x128xf32>
    %28 = arith.divf %26, %27 : vector<16x128xf32>
    %cst_4 = arith.constant 1.00000012 : f32
    %29 = vector.broadcast %cst_4 : f32 to vector<16x128xf32>
    %30 = arith.maximumf %28, %29 : vector<16x128xf32>
    %cst_5 = arith.constant 1.000000e+00 : f32
    %31 = vector.broadcast %cst_5 : f32 to vector<16x128xf32>
    %32 = arith.subf %30, %31 : vector<16x128xf32>
    %cst_6 = arith.constant 1.000000e+00 : f32
    %33 = vector.broadcast %cst_6 : f32 to vector<16x128xf32>
    %34 = arith.addf %30, %33 : vector<16x128xf32>
    %35 = arith.mulf %32, %34 : vector<16x128xf32>
    %36 = math.sqrt %35 : vector<16x128xf32>
    %37 = arith.addf %30, %36 : vector<16x128xf32>
    %38 = math.log %37 : vector<16x128xf32>
    %cst_7 = arith.constant 1.14017546 : f32
    %39 = vector.broadcast %cst_7 : f32 to vector<16x128xf32>
    %40 = arith.mulf %39, %38 : vector<16x128xf32>
    %cst_8 = arith.constant -5.000000e-01 : f32
    %41 = vector.broadcast %cst_8 : f32 to vector<16x128xf32>
    %42 = arith.mulf %41, %40 : vector<16x128xf32>
    %43 = math.exp %42 : vector<16x128xf32>
    %cst_9 = arith.constant 1.000000e+00 : f32
    %44 = vector.broadcast %cst_9 : f32 to vector<16x128xf32>
    %45 = arith.subf %44, %43 : vector<16x128xf32>
    %c0_10 = arith.constant 0 : index
    %c0_11 = arith.constant 0 : index
    %c0_12 = arith.constant 0 : index
    %46 = vector.load %arg2[%c0_10, %c0_11, %c0_12] : memref<2x16x128xf32, #tpu.memory_space<vmem>>, vector<1x16x128xf32>
    %47 = vector.shape_cast %46 : vector<1x16x128xf32> to vector<16x128xf32>
    %c1 = arith.constant 1 : index
    %c0_13 = arith.constant 0 : index
    %c0_14 = arith.constant 0 : index
    %48 = vector.load %arg2[%c1, %c0_13, %c0_14] : memref<2x16x128xf32, #tpu.memory_space<vmem>>, vector<1x16x128xf32>
    %49 = vector.shape_cast %48 : vector<1x16x128xf32> to vector<16x128xf32>
    %c0_15 = arith.constant 0 : index
    %c0_16 = arith.constant 0 : index
    %c0_17 = arith.constant 0 : index
    %50 = vector.load %arg3[%c0_15, %c0_16, %c0_17] : memref<2x1x128xf32, #tpu.memory_space<vmem>>, vector<1x1x128xf32>
    %51 = vector.shape_cast %50 : vector<1x1x128xf32> to vector<1x128xf32>
    %c1_18 = arith.constant 1 : index
    %c0_19 = arith.constant 0 : index
    %c0_20 = arith.constant 0 : index
    %52 = vector.load %arg3[%c1_18, %c0_19, %c0_20] : memref<2x1x128xf32, #tpu.memory_space<vmem>>, vector<1x1x128xf32>
    %53 = vector.shape_cast %52 : vector<1x1x128xf32> to vector<1x128xf32>
    %cst_21 = arith.constant 0.000000e+00 : f32
    %54 = vector.broadcast %cst_21 : f32 to vector<16x128xf32>
    %55 = arith.cmpf oeq, %47, %54 : vector<16x128xf32>
    %56 = arith.mulf %49, %45 : vector<16x128xf32>
    %57 = arith.select %55, %43, %56 : vector<16x128xi1>, vector<16x128xf32>
    %cst_22 = arith.constant 0.000000e+00 : f32
    %58 = vector.broadcast %cst_22 : f32 to vector<1x128xf32>
    %59 = arith.cmpf oeq, %51, %58 : vector<1x128xf32>
    %60 = vector.broadcast %53 : vector<1x128xf32> to vector<16x128xf32>
    %61 = arith.mulf %60, %45 : vector<16x128xf32>
    %62 = vector.shape_cast %59 : vector<1x128xi1> to vector<1x128xi1>
    %63 = vector.broadcast %62 : vector<1x128xi1> to vector<16x128xi1>
    %64 = arith.select %63, %43, %61 : vector<16x128xi1>, vector<16x128xf32>
    %65 = vector.broadcast %51 : vector<1x128xf32> to vector<16x128xf32>
    %66 = arith.cmpf oeq, %47, %65 : vector<16x128xf32>
    %cst_23 = arith.constant 0.000000e+00 : f32
    %67 = vector.broadcast %cst_23 : f32 to vector<16x128xf32>
    %68 = arith.cmpf one, %47, %67 : vector<16x128xf32>
    %69 = arith.andi %66, %68 : vector<16x128xi1>
    %cst_24 = arith.constant 0.166666672 : f32
    %70 = vector.broadcast %cst_24 : f32 to vector<16x128xf32>
    %71 = arith.mulf %70, %57 : vector<16x128xf32>
    %72 = arith.mulf %71, %64 : vector<16x128xf32>
    %cst_25 = arith.constant 0.166666672 : f32
    %cst_26 = arith.constant 0.000000e+00 : f32
    %73 = vector.broadcast %cst_25 : f32 to vector<16x128xf32>
    %74 = vector.broadcast %cst_26 : f32 to vector<16x128xf32>
    %75 = arith.select %69, %73, %74 : vector<16x128xi1>, vector<16x128xf32>
    %76 = arith.addf %72, %75 : vector<16x128xf32>
    %77 = tpu.iota {dimensions = array<i32: 1>} : vector<16x128xi32>
    %78 = tpu.iota {dimensions = array<i32: 0>} : vector<16x128xi32>
    %c15_i32 = arith.constant 15 : i32
    %79 = vector.broadcast %c15_i32 : i32 to vector<16x128xi32>
    %80 = arith.andi %77, %79 : vector<16x128xi32>
    %81 = arith.cmpi ne, %80, %78 : vector<16x128xi32>
    %cst_27 = arith.constant 1.000000e+00 : f32
    %82 = vector.broadcast %cst_27 : f32 to vector<16x128xf32>
    %83 = arith.select %81, %76, %82 : vector<16x128xi1>, vector<16x128xf32>
    %84 = math.log %83 : vector<16x128xf32>
    %cst_28 = arith.constant dense<0.000000e+00> : vector<16xf32>
    %85 = vector.multi_reduction <add>, %84, %cst_28 [1] : vector<16x128xf32> to vector<16xf32>
    %86 = vector.shape_cast %85 : vector<16xf32> to vector<16x1xf32>
    %c0_29 = arith.constant 0 : index
    %c0_30 = arith.constant 0 : index
    %87 = vector.load %arg4[%c0_29, %c0_30] : memref<16x1xf32, #tpu.memory_space<vmem>>, vector<16x1xf32>
    tpu.vector_store %arg4[%c0_29, %c0_30], %86 {strides = array<i32>} : memref<16x1xf32, #tpu.memory_space<vmem>>, vector<16x1xf32>,
    return
  }
}

</mosaic_0001>

<llo_original>
// kernel: tile.9
$region0: #{tile.9}
  %s0 = inlined_call_operand.vmem [shape: f32[4,8,16], index: 0, kind: input, shape index: {}]
  %s1 = inlined_call_operand.vmem [shape: f32[4,128], index: 1, kind: output, shape index: {}]
  $region1: #{tile.9} parent=0
    #allocation0 [shape = 'u8[4096]{0}', space=vmem, size = 0x1000, scoped, tag = 'scoped mem for output reshape']
    %v2 = vld [vmem:[%s0] ss:$8 sm:$0xf]
    %vm3 = vcmask 130048
    %4 = vst.msk [vmem:[#allocation0] sm:$0xf] %vm3, %v2
    %s5 = scalar_lea.vmem %s0, 7
    %v6 = vld [vmem:[%s5] ss:$8 sm:$0xf]
    %7 = vrot.lane.b32.xlu0 %v6, 112
    %v8 = vpop.permute.xlu0 %7
    %vm9 = vcmask 1048448
    %10 = vst.msk [vmem:[#allocation0] sm:$0xf] %vm9, %v8
    %s11 = scalar_lea.vmem %s0, 6
    %v12 = vld [vmem:[%s11] ss:$8 sm:$0xf]
    %13 = vrot.lane.b32.xlu0 %v12, 96
    %v14 = vpop.permute.xlu0 %13
    %vm15 = vcmask 917248
    %16 = vst.msk [vmem:[#allocation0] sm:$0xf] %vm15, %v14
    %s17 = scalar_lea.vmem %s0, 5
    %v18 = vld [vmem:[%s17] ss:$8 sm:$0xf]
    %19 = vrot.lane.b32.xlu0 %v18, 80
    %v20 = vpop.permute.xlu0 %19
    %vm21 = vcmask 786048
    %22 = vst.msk [vmem:[#allocation0] sm:$0xf] %vm21, %v20
    %s23 = scalar_lea.vmem %s0, 4
    %v24 = vld [vmem:[%s23] ss:$8 sm:$0xf]
    %25 = vrot.lane.b32.xlu0 %v24, 64
    %v26 = vpop.permute.xlu0 %25
    %vm27 = vcmask 654848
    %28 = vst.msk [vmem:[#allocation0] sm:$0xf] %vm27, %v26
    %s29 = scalar_lea.vmem %s0, 3
    %v30 = vld [vmem:[%s29] ss:$8 sm:$0xf]
    %31 = vrot.lane.b32.xlu0 %v30, 48
    %v32 = vpop.permute.xlu0 %31
    %vm33 = vcmask 523648
    %34 = vst.msk [vmem:[#allocation0] sm:$0xf] %vm33, %v32
    %s35 = scalar_lea.vmem %s0, 2
    %v36 = vld [vmem:[%s35] ss:$8 sm:$0xf]
    %37 = vrot.lane.b32.xlu0 %v36, 32
    %v38 = vpop.permute.xlu0 %37
    %vm39 = vcmask 392448
    %40 = vst.msk [vmem:[#allocation0] sm:$0xf] %vm39, %v38
    %s41 = scalar_lea.vmem %s0, 1
    %v42 = vld [vmem:[%s41] ss:$8 sm:$0xf]
    %43 = vrot.lane.b32.xlu0 %v42, 16
    %v44 = vpop.permute.xlu0 %43
    %vm45 = vcmask 261248
    %46 = vst.msk [vmem:[#allocation0] sm:$0xf] %vm45, %v44
    %s48 = sshllo.u32 0, 4
    %v50 = vld [vmem:[#allocation0] sm:%s48]
    %s51 = sshllo.u32 0, 4
    %52 = vst [vmem:[%s1] sm:%s51] %v50

// kernel: logalike_all.1
$region0: #{logalike_all.1}
  #allocation0 [shape = 'u32[]', space=smem, size = 0x4, offset = 0x4, fixed_abs, tag = 'smem constant byte address 0x4 - core index']
  #allocation1 [shape = 'u32[144,128]{1,0:T(1,128)}', space=vmem, size = 0x12000, scoped, tag = 'internal scratch']
  %s0 = inlined_call_operand.vmem [shape: f32[16,4], index: 0, kind: input, shape index: {}]
  %s1 = inlined_call_operand.vmem [shape: f32[4,128], index: 1, kind: input, shape index: {}]
  %s2 = inlined_call_operand.vmem [shape: f32[2,16,128], index: 2, kind: input, shape index: {}]
  %s3 = inlined_call_operand.vmem [shape: f32[2,1,128], index: 3, kind: input, shape index: {}]
  %s4 = inlined_call_operand.vmem [shape: f32[16,1], index: 4, kind: output, shape index: {}]
  %s5 = sld [smem:[#allocation0]]
  $region26: #{logalike_all.1} parent=0
    _
  %s7 = ssub.s32 1, %s5
  %s8 = scalar_select 0, %s7, %s5
  // Predicated region
  $region2: #{logalike_all.1} parent=0 // pred_check
    _
  $region3: #{logalike_all.1} parent=0 // pred_check_branch
    %10 = sbr.rel (0) target = $region5
  $region4: #{logalike_all.1} parent=0 // pred_region
    _
  $region5: #{logalike_all.1} parent=0 // pred_fallthru
    _
  // Predicated region
  $region6: #{logalike_all.1} parent=0 // pred_check
    _
  $region7: #{logalike_all.1} parent=0 // pred_check_branch
    %12 = sbr.rel (0) target = $region9
  $region8: #{logalike_all.1} parent=0 // pred_region
    _
  $region9: #{logalike_all.1} parent=0 // pred_fallthru
    _
  // Predicated region
  $region10: #{logalike_all.1} parent=0 // pred_check
    _
  $region11: #{logalike_all.1} parent=0 // pred_check_branch
    %14 = sbr.rel (0) target = $region13
  $region12: #{logalike_all.1} parent=0 // pred_region
    _
  $region13: #{logalike_all.1} parent=0 // pred_fallthru
    _
  // Predicated region
  $region14: #{logalike_all.1} parent=0 // pred_check
    _
  $region15: #{logalike_all.1} parent=0 // pred_check_branch
    %16 = sbr.rel (0) target = $region17
  $region16: #{logalike_all.1} parent=0 // pred_region
    _
  $region17: #{logalike_all.1} parent=0 // pred_fallthru
    _
  %v17 = vld [vmem:[%s0] sm:$0xff]
  %v18 = vld [vmem:[%s0 + $0x8] sm:$0xff]
  %v19 = vld [vmem:[%s1] sm:$0xf]
  %21 = vset.pattern.permute.xlu0 0
  %22 = vperm.xlu0 %21, %v17
  %v23 = vpop.permute.xlu0 %22
  %26 = vset.pattern.permute.xlu0 0
  %27 = vperm.xlu0 %26, %v18
  %v28 = vpop.permute.xlu0 %27
  %v30 = vlaneseq
  %v31 = vshrl.u32 %v30, 7
  %v32 = vsub.s32 0, %v31
  %v33 = vrot.slane %v19, %v32
  %v34 = vmul.f32 %v23, %v33
  %v35 = vmul.f32 %v28, %v33
  %36 = vset.pattern.permute.xlu0 1
  %37 = vperm.xlu0 %36, %v17
  %v38 = vpop.permute.xlu0 %37
  %40 = vset.pattern.permute.xlu0 1
  %41 = vperm.xlu0 %40, %v18
  %v42 = vpop.permute.xlu0 %41
  %v44 = vlaneseq
  %v45 = vshrl.u32 %v44, 7
  %v46 = vsub.s32 1, %v45
  %v47 = vrot.slane %v19, %v46
  %v48 = vmul.f32 %v38, %v47
  %v49 = vmul.f32 %v42, %v47
  %v50 = vadd.f32 %v34, %v48
  %v51 = vadd.f32 %v35, %v49
  %52 = vset.pattern.permute.xlu0 2
  %53 = vperm.xlu0 %52, %v17
  %v54 = vpop.permute.xlu0 %53
  %56 = vset.pattern.permute.xlu0 2
  %57 = vperm.xlu0 %56, %v18
  %v58 = vpop.permute.xlu0 %57
  %v60 = vlaneseq
  %v61 = vshrl.u32 %v60, 7
  %v62 = vsub.s32 2, %v61
  %v63 = vrot.slane %v19, %v62
  %v64 = vmul.f32 %v54, %v63
  %v65 = vmul.f32 %v58, %v63
  %v66 = vadd.f32 %v50, %v64
  %v67 = vadd.f32 %v51, %v65
  %68 = vset.pattern.permute.xlu0 3
  %69 = vperm.xlu0 %68, %v17
  %v70 = vpop.permute.xlu0 %69
  %72 = vset.pattern.permute.xlu0 3
  %73 = vperm.xlu0 %72, %v18
  %v74 = vpop.permute.xlu0 %73
  %v76 = vlaneseq
  %v77 = vshrl.u32 %v76, 7
  %v78 = vsub.s32 3, %v77
  %v79 = vrot.slane %v19, %v78
  %v80 = vmul.f32 %v70, %v79
  %v81 = vmul.f32 %v74, %v79
  %v82 = vadd.f32 %v66, %v80
  %v83 = vadd.f32 %v67, %v81
  %v84 = vsub.f32 0.0, %v82
  %v85 = vsub.f32 0.0, %v83
  %v86 = vrcp.pop 1.3
  %v87 = vmul.f32 %v84, %v86
  %v88 = vmul.f32 %v85, %v86
  %v89 = vmax.f32 %v87, 1.0000001
  %v90 = vmax.f32 %v88, 1.0000001
  %v91 = vsub.f32 %v89, 1.0
  %v92 = vsub.f32 %v90, 1.0
  %v93 = vadd.f32 %v89, 1.0
  %v94 = vadd.f32 %v90, 1.0
  %v95 = vmul.f32 %v91, %v93
  %v96 = vmul.f32 %v92, %v94
  %v97 = vrsqrt.pop %v95
  %v98 = vmul.f32 %v95, %v97
  %vm99 = vcmp.eq.f32.partialorder %v95, inf
  %v100 = vsel %vm99, %v95, %v98
  %vm101 = vcmp.eq.f32.partialorder %v95, 0.0
  %v102 = vand.u32 %v95, 2147483648
  %v103 = vsel %vm101, %v102, %v100
  %v104 = vrsqrt.pop %v96
  %v105 = vmul.f32 %v96, %v104
  %vm106 = vcmp.eq.f32.partialorder %v96, inf
  %v107 = vsel %vm106, %v96, %v105
  %vm108 = vcmp.eq.f32.partialorder %v96, 0.0
  %v109 = vand.u32 %v96, 2147483648
  %v110 = vsel %vm108, %v109, %v107
  %v111 = vadd.f32 %v89, %v103
  %v112 = vadd.f32 %v90, %v110
  %v113 = vlog2.pop %v111
  %v114 = vmul.f32 %v113, 0.6931472
  %v115 = vlog2.pop %v112
  %v116 = vmul.f32 %v115, 0.6931472
  %v117 = vmul.f32 %v114, 1.1401755
  %v118 = vmul.f32 %v116, 1.1401755
  %v119 = vmul.f32 %v117, -0.5
  %v120 = vmul.f32 %v118, -0.5
  %v121 = vmul.f32 %v119, 1.442695
  %v122 = vpow.pop %v121
  %v123 = vmul.f32 %v120, 1.442695
  %v124 = vpow.pop %v123
  %v125 = vsub.f32 1.0, %v122
  %v126 = vsub.f32 1.0, %v124
  %v127 = vld [vmem:[%s2] sm:$0xff]
  %v128 = vld [vmem:[%s2 + $0x8] sm:$0xff]
  %s129 = scalar_lea.vmem %s2, 16
  %v130 = vld [vmem:[%s129] sm:$0xff]
  %v131 = vld [vmem:[%s129 + $0x8] sm:$0xff]
  %v132 = vld [vmem:[%s3] sm:$0x1]
  %s133 = scalar_lea.vmem %s3, 1
  %v134 = vld [vmem:[%s133] sm:$0x1]
  %vm135 = vcmp.eq.f32.partialorder %v127, 0.0
  %vm136 = vcmp.eq.f32.partialorder %v128, 0.0
  %v137 = vmul.f32 %v130, %v125
  %v138 = vmul.f32 %v131, %v126
  %v139 = vsel %vm135, %v122, %v137
  %v140 = vsel %vm136, %v124, %v138
  %vm141 = vcmp.eq.f32.partialorder %v132, 0.0
  %v143 = vlaneseq
  %v144 = vshrl.u32 %v143, 7
  %v145 = vsub.s32 0, %v144
  %v146 = vrot.slane %v134, %v145
  %v148 = vmul.f32 %v146, %v125
  %v149 = vmul.f32 %v146, %v126
  %v150 = vsel %vm141, 1, 0
  %v151 = vlaneseq
  %v152 = vshrl.u32 %v151, 7
  %v153 = vsub.s32 0, %v152
  %v154 = vrot.slane %v150, %v153
  %vm155 = vcmp.eq.s32.totalorder %v154, 1
  %v156 = vsel %vm155, %v122, %v148
  %v157 = vsel %vm155, %v124, %v149
  %v159 = vlaneseq
  %v160 = vshrl.u32 %v159, 7
  %v161 = vsub.s32 0, %v160
  %v162 = vrot.slane %v132, %v161
  %vm164 = vcmp.eq.f32.partialorder %v127, %v162
  %vm165 = vcmp.eq.f32.partialorder %v128, %v162
  %vm166 = vcmp.ne.f32.partialorder %v127, 0.0
  %vm167 = vcmp.ne.f32.partialorder %v128, 0.0
  %vm168 = vmand %vm164, %vm166
  %vm169 = vmand %vm165, %vm167
  %v170 = vmul.f32 %v139, 0.16666667
  %v171 = vmul.f32 %v140, 0.16666667
  %v172 = vmul.f32 %v170, %v156
  %v173 = vmul.f32 %v171, %v157
  %v174 = vsel %vm168, 0.16666667, 0.0
  %v175 = vsel %vm169, 0.16666667, 0.0
  %v176 = vadd.f32 %v172, %v174
  %v177 = vadd.f32 %v173, %v175
  %v178 = vlaneseq
  %v179 = vand.u32 %v178, 127
  %v180 = vlaneseq
  %v181 = vshrl.u32 %v180, 7
  %v182 = vadd.s32 %v181, 8
  %v183 = vand.u32 %v179, 15
  %vm184 = vcmp.ne.s32.totalorder %v183, %v181
  %vm185 = vcmp.ne.s32.totalorder %v183, %v182
  %v186 = vsel %vm184, %v176, 1.0
  %v187 = vsel %vm185, %v177, 1.0
  %v188 = vlog2.pop %v186
  %v189 = vmul.f32 %v188, 0.6931472
  %v190 = vlog2.pop %v187
  %v191 = vmul.f32 %v190, 0.6931472
  %192 = vadd.xlane.f32.xlu0 %v189
  %v193 = vpop.xlane.xlu0 %192
  %194 = vadd.xlane.f32.xlu0 %v191
  %v195 = vpop.xlane.xlu0 %194
  %vm196 = vcmask 7168
  %197 = vst.msk [vmem:[%s4] sm:$0xff] %vm196, %v193
  %198 = vst.msk [vmem:[%s4 + $0x8] sm:$0xff] %vm196, %v195
  // Predicated region
  $region18: #{logalike_all.1} parent=0 // pred_check
    _
  $region19: #{logalike_all.1} parent=0 // pred_check_branch
    %200 = sbr.rel (0) target = $region21
  $region20: #{logalike_all.1} parent=0 // pred_region
    _
  $region21: #{logalike_all.1} parent=0 // pred_fallthru
    _
  // Predicated region
  $region22: #{logalike_all.1} parent=0 // pred_check
    _
  $region23: #{logalike_all.1} parent=0 // pred_check_branch
    %202 = sbr.rel (0) target = $region25
  $region24: #{logalike_all.1} parent=0 // pred_region
    _
  $region25: #{logalike_all.1} parent=0 // pred_fallthru
    _

</llo_original>
